<compile_context>
chip_gen: v6e
topology: v6e:2x2x1
jax: 0.10.0
libtpu: 0.0.40
codegen_flags: <defaults>
</compile_context>

<pallas_src>
import jax
import jax.numpy as jnp
from jax.experimental import pallas as pl
from jax.experimental.pallas import tpu as pltpu


def dqn_kernel(wf_ref, x_ref, o_ref):
    # wf_ref: SMEM (in_dim * out_dim,) f32 -- row-major (k, o) flattening of
    #         the fused weight Wf = W1.T @ W2.T.
    # x_ref:  VMEM (in_dim, bt)  -- batch on the 128-lane axis.
    # o_ref:  VMEM (out_dim, bt) -- batch on the 128-lane axis.
    in_dim = x_ref.shape[0]
    out_dim = o_ref.shape[0]

    # Load the in_dim (= 2) batch rows once; everything below is VPU FMAs.
    xrows = [x_ref[k:k + 1, :].astype(jnp.float32) for k in range(in_dim)]

    for o in range(out_dim):
        acc = wf_ref[o] * xrows[0]                       # wf[0, o] * x_T[0, :]
        for k in range(1, in_dim):
            acc = acc + wf_ref[k * out_dim + o] * xrows[k]
        o_ref[o:o + 1, :] = acc.astype(o_ref.dtype)


def dqn_forward(x, w1, w2, *, block_b=131072):
    """Forward pass of the bias-free 2-layer DQN: (x @ W1.T) @ W2.T.

    x:  (B, 2)    input states
    w1: (200, 2)  PyTorch fc1.weight layout
    w2: (3, 200)  PyTorch fc2.weight layout
    returns (B, 3)
    """
    B, in_dim = x.shape
    out_dim = w2.shape[0]

    # One-time fusion of the two bias-free linear layers (outside the kernel):
    # wf[k, o] = sum_h w1[h, k] * w2[o, h]   -> (in_dim, out_dim) = (2, 3)
    wf = jnp.einsum("hk,oh->ko",
                    w1.astype(jnp.float32), w2.astype(jnp.float32))
    wf_flat = wf.reshape(in_dim * out_dim)               # 6 scalars -> SMEM

    # Lane-dense layout: batch on the lane axis for both input and output.
    xt = x.T                                              # (in_dim, B)

    # Grid: single tile for any realistic batch.  Only tile (and let v7x's two
    # TensorCores split the "parallel" axis) for very large B; the tile stays a
    # multiple of 128 lanes and falls back to the whole batch if no clean tile
    # exists.
    bt = B
    if B > block_b and B % 128 == 0:
        bt = block_b
        while bt >= 128 and B % bt != 0:
            bt //= 2
        if bt < 128 or B % bt != 0:
            bt = B
    grid = (B // bt,)

    out_t = pl.pallas_call(
        dqn_kernel,
        out_shape=jax.ShapeDtypeStruct((out_dim, B), x.dtype),
        grid_spec=pltpu.PrefetchScalarGridSpec(
            num_scalar_prefetch=0,
            grid=grid,
            in_specs=[
                # Fused weight: 6 f32 scalars, resident in SMEM for the whole call.
                pl.BlockSpec(memory_space=pltpu.MemorySpace.SMEM),
                # Input tile: (in_dim, bt), batch on the lane axis.
                pl.BlockSpec((in_dim, bt), lambda i: (0, i)),
            ],
            out_specs=pl.BlockSpec((out_dim, bt), lambda i: (0, i)),
        ),
        compiler_params=pltpu.CompilerParams(
            dimension_semantics=("parallel",)),
    )(wf_flat, xt)

    # Restore the module's (B, out_dim) output layout.
    return out_t.T


if __name__ == "__main__":
    key = jax.random.PRNGKey(0)
    k_x, k_xb, k_xc, k_w1, k_w2 = jax.random.split(key, 5)

    IN, HID, OUT = 2, 200, 3

    # Deterministic synthetic parameters in PyTorch layout: W1 (200,2), W2 (3,200).
    w1 = jax.random.normal(k_w1, (HID, IN), dtype=jnp.float32) * 0.1
    w2 = jax.random.normal(k_w2, (OUT, HID), dtype=jnp.float32) * 0.1

    def ref_fwd(xx):
        return (xx @ w1.T) @ w2.T

    # Tiny per-step inference batch (MountainCar state is 2-D).
    x = jax.random.normal(k_x, (2, IN), dtype=jnp.float32)
    out = jax.block_until_ready(dqn_forward(x, w1, w2))
    assert out.shape == (2, OUT)
    assert jnp.allclose(out, ref_fwd(x), atol=1e-4, rtol=1e-4)

    # Replay-buffer-sized batch: single grid point (whole batch in one tile).
    xb = jax.random.normal(k_xb, (128, IN), dtype=jnp.float32)
    outb = jax.block_until_ready(dqn_forward(xb, w1, w2))
    assert outb.shape == (128, OUT)
    assert jnp.allclose(outb, ref_fwd(xb), atol=1e-4, rtol=1e-4)

    # Large-batch path: exercises the lane-axis tiling + "parallel" grid.
    xc = jax.random.normal(k_xc, (512, IN), dtype=jnp.float32)
    outc = jax.block_until_ready(dqn_forward(xc, w1, w2, block_b=256))
    assert outc.shape == (512, OUT)
    assert jnp.allclose(outc, ref_fwd(xc), atol=1e-4, rtol=1e-4)

    print("KERNEL_OK")
</pallas_src>

<mosaic_0001>
module attributes {stable_mosaic.version = 11 : i64} {
  func.func @dqn_kernel(%arg0: i32, %arg1: memref<6xf32, #tpu.memory_space<smem>>, %arg2: memref<2x2xf32, #tpu.memory_space<vmem>>, %arg3: memref<3x2xf32, #tpu.memory_space<vmem>>) attributes {dimension_semantics = [#tpu.dimension_semantics<parallel>], iteration_bounds = array<i64: 1>, scalar_prefetch = 0 : i64, scratch_operands = 0 : i64, tpu.core_type = #tpu.core_type<tc>, window_params = [{transform_indices = @transform_0, window_bounds = array<i64: 6>}, {transform_indices = @transform_1, window_bounds = array<i64: 2, 2>}, {transform_indices = @transform_2, window_bounds = array<i64: 3, 2>}]} {
    %c0 = arith.constant 0 : index
    %c0_0 = arith.constant 0 : index
    %0 = vector.load %arg2[%c0, %c0_0] : memref<2x2xf32, #tpu.memory_space<vmem>>, vector<1x2xf32>
    %c1 = arith.constant 1 : index
    %c0_1 = arith.constant 0 : index
    %1 = vector.load %arg2[%c1, %c0_1] : memref<2x2xf32, #tpu.memory_space<vmem>>, vector<1x2xf32>
    %c0_2 = arith.constant 0 : index
    %2 = memref.load %arg1[%c0_2] : memref<6xf32, #tpu.memory_space<smem>>
    %3 = vector.broadcast %2 : f32 to vector<1x2xf32>
    %4 = arith.mulf %3, %0 : vector<1x2xf32>
    %c3 = arith.constant 3 : index
    %5 = memref.load %arg1[%c3] : memref<6xf32, #tpu.memory_space<smem>>
    %6 = vector.broadcast %5 : f32 to vector<1x2xf32>
    %7 = arith.mulf %6, %1 : vector<1x2xf32>
    %8 = arith.addf %4, %7 : vector<1x2xf32>
    %c0_3 = arith.constant 0 : index
    %c0_4 = arith.constant 0 : index
    %9 = vector.load %arg3[%c0_3, %c0_4] : memref<3x2xf32, #tpu.memory_space<vmem>>, vector<1x2xf32>
    tpu.vector_store %arg3[%c0_3, %c0_4], %8 {strides = array<i32>} : memref<3x2xf32, #tpu.memory_space<vmem>>, vector<1x2xf32>,
    %c1_5 = arith.constant 1 : index
    %10 = memref.load %arg1[%c1_5] : memref<6xf32, #tpu.memory_space<smem>>
    %11 = vector.broadcast %10 : f32 to vector<1x2xf32>
    %12 = arith.mulf %11, %0 : vector<1x2xf32>
    %c4 = arith.constant 4 : index
    %13 = memref.load %arg1[%c4] : memref<6xf32, #tpu.memory_space<smem>>
    %14 = vector.broadcast %13 : f32 to vector<1x2xf32>
    %15 = arith.mulf %14, %1 : vector<1x2xf32>
    %16 = arith.addf %12, %15 : vector<1x2xf32>
    %c1_6 = arith.constant 1 : index
    %c0_7 = arith.constant 0 : index
    %17 = vector.load %arg3[%c1_6, %c0_7] : memref<3x2xf32, #tpu.memory_space<vmem>>, vector<1x2xf32>
    tpu.vector_store %arg3[%c1_6, %c0_7], %16 {strides = array<i32>} : memref<3x2xf32, #tpu.memory_space<vmem>>, vector<1x2xf32>,
    %c2 = arith.constant 2 : index
    %18 = memref.load %arg1[%c2] : memref<6xf32, #tpu.memory_space<smem>>
    %19 = vector.broadcast %18 : f32 to vector<1x2xf32>
    %20 = arith.mulf %19, %0 : vector<1x2xf32>
    %c5 = arith.constant 5 : index
    %21 = memref.load %arg1[%c5] : memref<6xf32, #tpu.memory_space<smem>>
    %22 = vector.broadcast %21 : f32 to vector<1x2xf32>
    %23 = arith.mulf %22, %1 : vector<1x2xf32>
    %24 = arith.addf %20, %23 : vector<1x2xf32>
    %c2_8 = arith.constant 2 : index
    %c0_9 = arith.constant 0 : index
    %25 = vector.load %arg3[%c2_8, %c0_9] : memref<3x2xf32, #tpu.memory_space<vmem>>, vector<1x2xf32>
    tpu.vector_store %arg3[%c2_8, %c0_9], %24 {strides = array<i32>} : memref<3x2xf32, #tpu.memory_space<vmem>>, vector<1x2xf32>,
    return
  }
  func.func @transform_0(%arg0: i32) -> i32 {
    %c0_i32 = arith.constant 0 : i32
    %c0_i32_0 = arith.constant 0 : i32
    return %c0_i32 : i32
  }
  func.func @transform_1(%arg0: i32) -> (i32, i32) {
    %c0_i32 = arith.constant 0 : i32
    %c0_i32_0 = arith.constant 0 : i32
    return %c0_i32, %arg0 : i32, i32
  }
  func.func @transform_2(%arg0: i32) -> (i32, i32) {
    %c0_i32 = arith.constant 0 : i32
    %c0_i32_0 = arith.constant 0 : i32
    return %c0_i32, %arg0 : i32, i32
  }
}

</mosaic_0001>

<llo_original>
// kernel: tpu_custom_call.1
$region0: #{tpu_custom_call.1}
  #allocation0 [shape = 'u32[]', space=smem, size = 0x4, offset = 0x4, fixed_abs, tag = 'smem constant byte address 0x4 - core index']
  #allocation1 [shape = 'u32[144,128]{1,0:T(1,128)}', space=vmem, size = 0x12000, scoped, tag = 'internal scratch']
  %s0 = inlined_call_operand.hbm [shape: f32[6], index: 0, kind: input, shape index: {}]
  %s1 = inlined_call_operand.hbm [shape: f32[2,2], index: 1, kind: input, shape index: {}]
  %s2 = inlined_call_operand.vmem [shape: f32[3,2], index: 2, kind: output, shape index: {}]
  %s3 = sld [smem:[#allocation0]]
  $region26: #{tpu_custom_call.1} parent=0
    _
  %s5 = ssub.s32 1, %s3
  %s6 = scalar_select 0, %s5, %s3
  $region1: #{tpu_custom_call.1} parent=0
    #allocation2 [shape = 'u8[512]{0}', space=smem, size = 0x200, scoped, tag = 'input window, operand 0, single buffered']
    #allocation3 [shape = 's32[1]{0}', space=sflag, size = 0x4, scoped, tag = 'scoped memory for tpu_custom_call.1']
    #allocation4 [shape = 's32[1]{0}', space=sflag, size = 0x4, scoped, tag = 'scoped memory for tpu_custom_call.1']
    #allocation5 [shape = 'u8[1024]{0}', space=vmem, size = 0x400, scoped, tag = 'input window, operand 1, single buffered']
    %7 = vsyncpa [#allocation4], 0
    %8 = vsyncpa [#allocation3], 0
    // Predicated region
    $region2: #{tpu_custom_call.1} parent=1 // pred_check
      _
    $region3: #{tpu_custom_call.1} parent=1 // pred_check_branch
      %10 = sbr.rel (0) target = $region5
    $region4: #{tpu_custom_call.1} parent=1 // pred_region
      %s12 = ssub.s32 16, 16
      %13 = vsyncadd [#allocation4], %s12
      %16 = dma.hbm_to_smem %s0, 16, [#allocation2], [#allocation4]
    $region5: #{tpu_custom_call.1} parent=1 // pred_fallthru
      _
    // Predicated region
    $region6: #{tpu_custom_call.1} parent=1 // pred_check
      _
    $region7: #{tpu_custom_call.1} parent=1 // pred_check_branch
      %18 = sbr.rel (0) target = $region9
    $region8: #{tpu_custom_call.1} parent=1 // pred_region
      %s20 = ssub.s32 32, 32
      %21 = vsyncadd [#allocation3], %s20
      %s23 = sshll.u32 [#allocation5], 4
      %s24 = int_to_ptr.vmem [resolvable:$true] %s23
      %26 = dma.hbm_to_vmem [thread:$0]  %s1, 32, %s24, [#allocation3]
    $region9: #{tpu_custom_call.1} parent=1 // pred_fallthru
      _
    // Predicated region
    $region10: #{tpu_custom_call.1} parent=1 // pred_check
      _
    $region11: #{tpu_custom_call.1} parent=1 // pred_check_branch
      %28 = sbr.rel (0) target = $region13
    $region12: #{tpu_custom_call.1} parent=1 // pred_region
      %29 = dma.done [#allocation4], 16
    $region13: #{tpu_custom_call.1} parent=1 // pred_fallthru
      _
    // Predicated region
    $region14: #{tpu_custom_call.1} parent=1 // pred_check
      _
    $region15: #{tpu_custom_call.1} parent=1 // pred_check_branch
      %31 = sbr.rel (0) target = $region17
    $region16: #{tpu_custom_call.1} parent=1 // pred_region
      %32 = dma.done [#allocation3], 32
    $region17: #{tpu_custom_call.1} parent=1 // pred_fallthru
      _
    %33 = sfence
    %v34 = vld [vmem:[#allocation5] sm:$0x1]
    %v35 = vld [vmem:[#allocation5 + $0x1] sm:$0x1]
    %s36 = sld [smem:[#allocation2]]
    %v37 = vstv %s36
    %v38 = vmul.f32 %v37, %v34
    %s39 = sld [smem:[#allocation2 + $0x3]]
    %v40 = vstv %s39
    %v41 = vmul.f32 %v40, %v35
    %v42 = vadd.f32 %v38, %v41
    %vm43 = vcmask 8192
    %44 = vst.msk [vmem:[%s2] sm:$0x1] %vm43, %v42
    %s45 = sld [smem:[#allocation2 + $0x1]]
    %v46 = vstv %s45
    %v47 = vmul.f32 %v46, %v34
    %s48 = sld [smem:[#allocation2 + $0x4]]
    %v49 = vstv %s48
    %v50 = vmul.f32 %v49, %v35
    %v51 = vadd.f32 %v47, %v50
    %52 = vst.msk [vmem:[%s2 + $0x1] sm:$0x1] %vm43, %v51
    %s53 = sld [smem:[#allocation2 + $0x2]]
    %v54 = vstv %s53
    %v55 = vmul.f32 %v54, %v34
    %s56 = sld [smem:[#allocation2 + $0x5]]
    %v57 = vstv %s56
    %v58 = vmul.f32 %v57, %v35
    %v59 = vadd.f32 %v55, %v58
    %60 = vst.msk [vmem:[%s2 + $0x2] sm:$0x1] %vm43, %v59
    // Predicated region
    $region18: #{tpu_custom_call.1} parent=1 // pred_check
      _
    $region19: #{tpu_custom_call.1} parent=1 // pred_check_branch
      %62 = sbr.rel (0) target = $region21
    $region20: #{tpu_custom_call.1} parent=1 // pred_region
      _
    $region21: #{tpu_custom_call.1} parent=1 // pred_fallthru
      _
    // Predicated region
    $region22: #{tpu_custom_call.1} parent=1 // pred_check
      _
    $region23: #{tpu_custom_call.1} parent=1 // pred_check_branch
      %64 = sbr.rel (0) target = $region25
    $region24: #{tpu_custom_call.1} parent=1 // pred_region
      _
    $region25: #{tpu_custom_call.1} parent=1 // pred_fallthru
      _
    %65 = vsyncpa [#allocation3], 1
    %66 = vsyncpa [#allocation4], 1

</llo_original>
